<compile_context>
chip_gen: v7x
topology: tpu7x:2x2x1
jax: 0.10.0
libtpu: 0.0.40
codegen_flags: <defaults>
</compile_context>

<pallas_src>
import functools

import jax
import jax.numpy as jnp
from jax.experimental import pallas as pl
from jax.experimental.pallas import tpu as pltpu


def _gcn_kernel(at_ref, x_ref, o_ref, h_ref):
    """Grid = (M tiles, order). One step: h <- A^T @ h (h seeded with x at k==0)."""
    k = pl.program_id(1)

    # Re-seed the carried activation at the start of every M-tile's k-loop.
    @pl.when(k == 0)
    def _():
        h_ref[...] = x_ref[...].astype(jnp.float32)

    # Single MXU matmul per grid step; no in-kernel transpose, no power matmul.
    h = jnp.dot(at_ref[...], h_ref[...], preferred_element_type=jnp.float32)
    h_ref[...] = h
    o_ref[...] = h.astype(o_ref.dtype)


def _round_up(x, mult):
    return ((x + mult - 1) // mult) * mult


@functools.partial(jax.jit, static_argnames=("order",))
def gcn_forward(x, a, order):
    """x: (N, C, V, L) float32, a: (V, V) float32 -> (N, order*C, V, L)."""
    n, c, v, l = x.shape
    m = n * c * l

    # (N, C, V, L) -> (V, N, C, L) -> (V, M): contraction over V becomes a matmul.
    # TODO(synk): the input/output layout transposes are separate XLA HBM passes;
    # they could be fused into the kernel by gridding over (N*C) if needed.
    xm = jnp.transpose(x, (2, 0, 1, 3)).reshape(v, m)

    # Lane-dense M tiling. TM kept modest so (2x in + 2x out + scratch) blocks
    # stay far below the v7x 32 MiB default scoped VMEM limit even for large V.
    tm_max = 2048
    m_pad = _round_up(m, 128)
    tm = min(m_pad, tm_max)
    m_pad = _round_up(m_pad, tm)
    if m_pad != m:
        xm = jnp.pad(xm, ((0, 0), (0, m_pad - m)))

    # Pre-transpose A once in the wrapper: kernel computes A^T @ h with no .T.
    at = jnp.transpose(a)

    grid = (m_pad // tm, order)
    cost = pl.CostEstimate(
        flops=2 * order * v * v * m_pad,
        transcendentals=0,
        bytes_accessed=4 * (v * m_pad + v * v + order * v * m_pad),
    )

    out = pl.pallas_call(
        _gcn_kernel,
        out_shape=jax.ShapeDtypeStruct((order, v, m_pad), x.dtype),
        grid_spec=pltpu.PrefetchScalarGridSpec(
            num_scalar_prefetch=0,
            grid=grid,
            in_specs=[
                # A^T: grid-invariant (fetched once).
                pl.BlockSpec((v, v), lambda mi, k: (0, 0)),
                # x tile: varies only with the M-tile index.
                pl.BlockSpec((v, tm), lambda mi, k: (0, mi)),
            ],
            # Leading `order` dim squeezed -> o_ref is a plain (v, tm) block.
            out_specs=pl.BlockSpec((None, v, tm), lambda mi, k: (k, 0, mi)),
            scratch_shapes=[pltpu.VMEM((v, tm), jnp.float32)],
        ),
        compiler_params=pltpu.CompilerParams(
            # M-tiles independent (megacore-shardable on v7x); k carries state.
            dimension_semantics=("parallel", "arbitrary"),
        ),
        cost_estimate=cost,
    )(at, xm)

    # (order, V, M_pad) -> (order, V, M) -> (N, order*C, V, L)
    out = out[:, :, :m]
    out = out.reshape(order, v, n, c, l)
    out = jnp.transpose(out, (2, 0, 3, 1, 4)).reshape(n, order * c, v, l)
    return out


def _reference(x, a, order):
    outs = []
    ak = a
    for k in range(order):
        if k > 0:
            ak = ak @ a
        outs.append(jnp.einsum("ncvl,vw->ncwl", x, ak))
    return jnp.concatenate(outs, axis=1)


if __name__ == "__main__":
    key = jax.random.PRNGKey(0)
    kx, ka = jax.random.split(key)

    N, C, V, L = 2, 4, 8, 16  # x: (N, C, V, L); M = N*C*L = 128 (lane-dense)
    order = 3

    x = jax.random.normal(kx, (N, C, V, L), dtype=jnp.float32)
    # Scale A so chained products stay well-conditioned numerically.
    A = jax.random.normal(ka, (V, V), dtype=jnp.float32) / jnp.sqrt(V)

    out = gcn_forward(x, A, order)
    out = jax.block_until_ready(out)

    ref = _reference(x, A, order)
    assert out.shape == (N, order * C, V, L)
    assert jnp.allclose(out, ref, atol=1e-4, rtol=1e-4)

    print("KERNEL_OK")
</pallas_src>

<mosaic_0001>
module attributes {stable_mosaic.version = 11 : i64} {
  func.func @_gcn_kernel(%arg0: i32, %arg1: i32, %arg2: memref<8x8xf32, #tpu.memory_space<vmem>>, %arg3: memref<8x128xf32, #tpu.memory_space<vmem>>, %arg4: memref<1x8x128xf32, #tpu.memory_space<vmem>>, %arg5: memref<8x128xf32, #tpu.memory_space<vmem>>) attributes {dimension_semantics = [#tpu.dimension_semantics<parallel>, #tpu.dimension_semantics<arbitrary>], iteration_bounds = array<i64: 1, 3>, scalar_prefetch = 0 : i64, scratch_operands = 1 : i64, tpu.core_type = #tpu.core_type<tc>, window_params = [{pipeline_mode = #tpu.pipeline_mode<synchronous>, transform_indices = @transform_0, window_bounds = array<i64: 8, 8>}, {transform_indices = @transform_1, window_bounds = array<i64: 8, 128>}, {transform_indices = @transform_2, window_bounds = array<i64: 1, 8, 128>}]} {
    %c0_i32 = arith.constant 0 : i32
    %0 = arith.cmpi eq, %arg1, %c0_i32 : i32
    %1 = arith.extui %0 : i1 to i32
    %c0_i32_0 = arith.constant 0 : i32
    %2 = arith.cmpi ne, %1, %c0_i32_0 : i32
    scf.if %2 {
      %c0_9 = arith.constant 0 : index
      %c0_10 = arith.constant 0 : index
      %10 = vector.load %arg3[%c0_9, %c0_10] : memref<8x128xf32, #tpu.memory_space<vmem>>, vector<8x128xf32>
      %c0_11 = arith.constant 0 : index
      %c0_12 = arith.constant 0 : index
      %11 = vector.load %arg5[%c0_11, %c0_12] : memref<8x128xf32, #tpu.memory_space<vmem>>, vector<8x128xf32>
      tpu.vector_store %arg5[%c0_11, %c0_12], %10 {strides = array<i32>} : memref<8x128xf32, #tpu.memory_space<vmem>>, vector<8x128xf32>,
    } else {
    }
    %c0 = arith.constant 0 : index
    %c0_1 = arith.constant 0 : index
    %3 = vector.load %arg2[%c0, %c0_1] : memref<8x8xf32, #tpu.memory_space<vmem>>, vector<8x8xf32>
    %c0_2 = arith.constant 0 : index
    %c0_3 = arith.constant 0 : index
    %4 = vector.load %arg5[%c0_2, %c0_3] : memref<8x128xf32, #tpu.memory_space<vmem>>, vector<8x128xf32>
    %cst = arith.constant dense<0.000000e+00> : vector<8x128xf32>
    %5 = tpu.matmul %3, %4, %cst {dimension_numbers = #tpu.dot_dimension_numbers<[1], [0], [0], [1], [0, 0, 1, 1], [], []>} : vector<8x8xf32>, vector<8x128xf32>, vector<8x128xf32> -> vector<8x128xf32>
    %c0_4 = arith.constant 0 : index
    %c0_5 = arith.constant 0 : index
    %6 = vector.load %arg5[%c0_4, %c0_5] : memref<8x128xf32, #tpu.memory_space<vmem>>, vector<8x128xf32>
    tpu.vector_store %arg5[%c0_4, %c0_5], %5 {strides = array<i32>} : memref<8x128xf32, #tpu.memory_space<vmem>>, vector<8x128xf32>,
    %c0_6 = arith.constant 0 : index
    %c0_7 = arith.constant 0 : index
    %c0_8 = arith.constant 0 : index
    %7 = vector.load %arg4[%c0_6, %c0_7, %c0_8] : memref<1x8x128xf32, #tpu.memory_space<vmem>>, vector<1x8x128xf32>
    %8 = vector.shape_cast %7 : vector<1x8x128xf32> to vector<8x128xf32>
    %9 = vector.shape_cast %5 : vector<8x128xf32> to vector<1x8x128xf32>
    tpu.vector_store %arg4[%c0_6, %c0_7, %c0_8], %9 {strides = array<i32>} : memref<1x8x128xf32, #tpu.memory_space<vmem>>, vector<1x8x128xf32>,
    return
  }
  func.func @transform_0(%arg0: i32, %arg1: i32) -> (i32, i32) {
    %c0_i32 = arith.constant 0 : i32
    %c0_i32_0 = arith.constant 0 : i32
    %c0_i32_1 = arith.constant 0 : i32
    return %c0_i32, %c0_i32_0 : i32, i32
  }
  func.func @transform_1(%arg0: i32, %arg1: i32) -> (i32, i32) {
    %c0_i32 = arith.constant 0 : i32
    %c0_i32_0 = arith.constant 0 : i32
    return %c0_i32, %arg0 : i32, i32
  }
  func.func @transform_2(%arg0: i32, %arg1: i32) -> (i32, i32, i32) {
    %c0_i32 = arith.constant 0 : i32
    %c0_i32_0 = arith.constant 0 : i32
    return %arg1, %c0_i32, %arg0 : i32, i32, i32
  }
}

</mosaic_0001>

<llo_original>
// kernel: gcn_forward.1
$region0: #{gcn_forward.1}
  #allocation0 [shape = 'u32[]', space=smem, size = 0x4, offset = 0x4, fixed_abs, tag = 'smem constant byte address 0x4 - core index']
  #allocation1 [shape = 'u32[144,128]{1,0:T(1,128)}', space=vmem, size = 0x12000, scoped, tag = 'internal scratch']
  #allocation2 [shape = 'f32[8,128]{1,0:T(8,128)}', space=vmem, size = 0x1000, scoped, tag = 'scratch operand']
  %s0 = inlined_call_operand.vmem [shape: f32[8,8], index: 0, kind: input, shape index: {}]
  %s1 = inlined_call_operand.vmem [shape: f32[8,128], index: 1, kind: input, shape index: {}]
  %s2 = inlined_call_operand.vmem [shape: f32[3,8,128], index: 2, kind: output, shape index: {}]
  %s3 = sld [smem:[#allocation0]]
  $region45: #{gcn_forward.1} parent=0
    _
  %s5 = ssub.s32 1, %s3
  %s6 = scalar_select 0, %s5, %s3
  loop: start=0, step=1, limit=5
  $region2: #{gcn_forward.1} parent=0 // loop_pre_header
    _
  $region3: #{gcn_forward.1} parent=0 // loop_header
    %s8 = sphi 0, %s12
    %p9 = scmp.ge.s32.totalorder %s8, 5
    %s15 = sphi 0, %s27
    %s16 = sphi 0, %s23
    %s17 = sphi 0, %s15
    %s18 = sphi 0, %s16
    %s19 = sphi 0, %s17
    %s20 = sphi 0, %s18
    %s28 = sphi 0, %s28
    %s30 = sphi 0, %s28
    %s31 = sphi 0, %s30
    %s45 = sphi 0, %s31
    %s51 = sphi 0, %s53
    %s54 = sphi 0, %s51
    %s55 = sphi 0, %s54
    %s71 = sphi 0, %s55
    %s79 = sphi 0, %s81
    %s82 = sphi 0, %s79
    %s83 = sphi 0, %s82
    %s99 = sphi 0, %s83
  $region4: #{gcn_forward.1} parent=0 // loop_header_branch
    %11 = sbr.rel (%p9) target = $region8
  $region5: #{gcn_forward.1} parent=0 // loop_body
    %s13 = ssub.s32 %s8, 1
    %s14 = ssub.s32 %s8, 2
    %s21 = sadd.s32 1, %s16
    %p22 = scmp.ge.s32.totalorder %s21, 3
    %s23 = scalar_select %p22, 0, %s21
    %s24 = sadd.s32 1, %s15
    %s25 = scalar_select %p22, %s24, %s15
    %p26 = scmp.ge.s32.totalorder %s25, 1
    %s27 = scalar_select %p26, 0, %s25
    %s29 = sadd.s32 %s28, 1
    %p32 = scmp.eq.s32.totalorder %s8, 2
    %p33 = scmp.ne.s32.totalorder %s28, %s30
    %p34 = scmp.eq.s32.totalorder %s8, 0
    %p35 = por %p33, %p34
    %p36 = scmp.ne.s32.totalorder %s28, %s30
    %p37 = scmp.eq.s32.totalorder %s13, 2
    %p38 = por %p36, %p37
    %p39 = scmp.ne.s32.totalorder %s30, %s31
    %p40 = scmp.eq.s32.totalorder %s13, 0
    %p41 = por %p39, %p40
    %p42 = scmp.ne.s32.totalorder %s30, %s31
    %p43 = scmp.eq.s32.totalorder %s14, 2
    %p44 = por %p42, %p43
    %p46 = scmp.ne.s32.totalorder %s31, %s45
    %p47 = scmp.eq.s32.totalorder %s14, 0
    %p48 = por %p46, %p47
    %s49 = ssub.s32 %s15, %s27
    %p50 = scmp.eq.s32.totalorder %s49, 0
    %s52 = sadd.s32 %s51, 1
    %s53 = scalar_select %p50, %s51, %s52
    %p56 = pneg %p50
    %p57 = scmp.eq.s32.totalorder %s8, 2
    %p58 = por %p56, %p57
    %p59 = scmp.ne.s32.totalorder %s51, %s54
    %p60 = scmp.eq.s32.totalorder %s8, 0
    %p61 = por %p59, %p60
    %p62 = scmp.ne.s32.totalorder %s51, %s54
    %p63 = scmp.eq.s32.totalorder %s13, 2
    %p64 = por %p62, %p63
    %p65 = scmp.ne.s32.totalorder %s54, %s55
    %p66 = scmp.eq.s32.totalorder %s13, 0
    %p67 = por %p65, %p66
    %p68 = scmp.ne.s32.totalorder %s54, %s55
    %p69 = scmp.eq.s32.totalorder %s14, 2
    %p70 = por %p68, %p69
    %p72 = scmp.ne.s32.totalorder %s55, %s71
    %p73 = scmp.eq.s32.totalorder %s14, 0
    %p74 = por %p72, %p73
    %s75 = ssub.s32 %s16, %s23
    %s76 = ssub.s32 %s15, %s27
    %s77 = sor.u32 %s75, %s76
    %p78 = scmp.eq.s32.totalorder %s77, 0
    %s80 = sadd.s32 %s79, 1
    %s81 = scalar_select %p78, %s79, %s80
    %p84 = pneg %p78
    %p85 = scmp.eq.s32.totalorder %s8, 2
    %p86 = por %p84, %p85
    %p87 = scmp.ne.s32.totalorder %s79, %s82
    %p88 = scmp.eq.s32.totalorder %s8, 0
    %p89 = por %p87, %p88
    %p90 = scmp.ne.s32.totalorder %s79, %s82
    %p91 = scmp.eq.s32.totalorder %s13, 2
    %p92 = por %p90, %p91
    %p93 = scmp.ne.s32.totalorder %s82, %s83
    %p94 = scmp.eq.s32.totalorder %s13, 0
    %p95 = por %p93, %p94
    %p96 = scmp.ne.s32.totalorder %s82, %s83
    %p97 = scmp.eq.s32.totalorder %s14, 2
    %p98 = por %p96, %p97
    %p100 = scmp.ne.s32.totalorder %s83, %s99
    %p101 = scmp.eq.s32.totalorder %s14, 0
    %p102 = por %p100, %p101
    %p103 = scmp.le.s32.totalorder 1, %s8
    %p104 = scmp.lt.s32.totalorder %s8, 4
    %p105 = pnand %p103, %p104
    %p106 = pneg %p105
    // Predicated region
    $region9: #{gcn_forward.1} parent=5 // pred_check
      _
    $region10: #{gcn_forward.1} parent=5 // pred_check_branch
      %108 = sbr.rel (%p105) target = $region12
    $region11: #{gcn_forward.1} parent=5 // pred_region
      %s109 = ssub.s32 %s8, 1
      // Predicated region
      $region13: #{gcn_forward.1} parent=11 // pred_check
        %p110 = pneg %p41
      $region14: #{gcn_forward.1} parent=11 // pred_check_branch
        %112 = sbr.rel (%p110) target = $region16
      $region15: #{gcn_forward.1} parent=11 // pred_region
        _
      $region16: #{gcn_forward.1} parent=11 // pred_fallthru
        _
      // Predicated region
      $region17: #{gcn_forward.1} parent=11 // pred_check
        %p113 = pneg %p67
      $region18: #{gcn_forward.1} parent=11 // pred_check_branch
        %115 = sbr.rel (%p113) target = $region20
      $region19: #{gcn_forward.1} parent=11 // pred_region
        %p116 = scmp.lt.s32.totalorder %s17, 0
        %s117 = scalar_select %p116, %s17, 0
        %s118 = smul.addr %s117, 8
        %s119 = scalar_lea.vmem %s1, %s118
      $region20: #{gcn_forward.1} parent=11 // pred_fallthru
        _
    $region12: #{gcn_forward.1} parent=5 // pred_fallthru
      _
    %p120 = scmp.lt.s32.totalorder %s8, 3
    // Predicated region
    $region21: #{gcn_forward.1} parent=5 // pred_check
      %p121 = pneg %p120
    $region22: #{gcn_forward.1} parent=5 // pred_check_branch
      %123 = sbr.rel (%p121) target = $region24
    $region23: #{gcn_forward.1} parent=5 // pred_region
      _
    $region24: #{gcn_forward.1} parent=5 // pred_fallthru
      _
    %p124 = scmp.le.s32.totalorder 1, %s8
    %p125 = scmp.lt.s32.totalorder %s8, 4
    %p126 = pnand %p124, %p125
    %p127 = pneg %p126
    // Predicated region
    $region25: #{gcn_forward.1} parent=5 // pred_check
      _
    $region26: #{gcn_forward.1} parent=5 // pred_check_branch
      %129 = sbr.rel (%p126) target = $region28
    $region27: #{gcn_forward.1} parent=5 // pred_region
      %s130 = ssub.s32 %s8, 1
      %p131 = pneg %p41
      %p132 = pneg %p38
      %p133 = scmp.lt.s32.totalorder %s17, 0
      %s134 = scalar_select %p133, %s17, 0
      %s135 = smul.addr %s134, 8
      %s136 = scalar_lea.vmem %s1, %s135
      %p137 = pneg %p67
      %p138 = pneg %p64
      %p139 = pneg %p95
      %p140 = pneg %p92
      %p141 = scmp.lt.s32.totalorder %s18, 2
      %s142 = scalar_select %p141, %s18, 2
      %p143 = scmp.lt.s32.totalorder %s17, 0
      %s144 = scalar_select %p143, %s17, 0
      %s145 = sadd.s32 %s144, %s142
      %s146 = smul.addr %s145, 8
      %s147 = scalar_lea.vmem %s2, %s146
      %p148 = scmp.lt.s32.totalorder %s17, 0
      %s149 = scalar_select %p148, %s17, 0
      %s150 = smul.addr %s149, 8
      %s151 = scalar_lea.vmem %s1, %s150
      %p152 = scmp.lt.s32.totalorder %s18, 2
      %s153 = scalar_select %p152, %s18, 2
      %p154 = scmp.lt.s32.totalorder %s17, 0
      %s155 = scalar_select %p154, %s17, 0
      %s156 = sadd.s32 %s155, %s153
      %s157 = smul.addr %s156, 8
      %s158 = scalar_lea.vmem %s2, %s157
      %p159 = scmp.eq.s32.totalorder %s18, 0
      // Predicated region
      $region29: #{gcn_forward.1} parent=27 // pred_check
        %p160 = pneg %p159
      $region30: #{gcn_forward.1} parent=27 // pred_check_branch
        %162 = sbr.rel (%p160) target = $region32
      $region31: #{gcn_forward.1} parent=27 // pred_region
        %v163 = vld [vmem:[%s151] sm:$0xff]
        %164 = vst [vmem:[#allocation2] sm:$0xff] %v163
      $region32: #{gcn_forward.1} parent=27 // pred_fallthru
        _
      %v165 = vld [vmem:[%s0] sm:$0xff]
      %v166 = vld [vmem:[#allocation2] sm:$0xff]
      %vm167 = vcmask 64512
      %v169 = vsel %vm167, %v165, 0
      %171 = vmatprep.subr.mxu0 0.0
      %172 = vmatpush1.msra.mxu0 %v166
      %173 = vmatprep.subr.mxu0 0.0
      %174 = vmatpush1.msra.mxu0 0.0
      %175 = vmatprep.subr.mxu0 0.0
      %176 = vmatpush1.msra.mxu0 0.0
      %177 = vmatprep.subr.mxu0 0.0
      %178 = vmatpush1.msra.mxu0 0.0
      %179 = vmatprep.subr.mxu0 0.0
      %180 = vmatpush1.msra.mxu0 0.0
      %181 = vmatprep.subr.mxu0 0.0
      %182 = vmatpush1.msra.mxu0 0.0
      %183 = vmatprep.subr.mxu0 0.0
      %184 = vmatpush1.msra.mxu0 0.0
      %185 = vmatprep.subr.mxu0 0.0
      %186 = vmatpush1.msra.mxu0 0.0
      %187 = vmatprep.subr.mxu0 0.0
      %188 = vmatpush1.msra.mxu0 0.0
      %189 = vmatprep.subr.mxu0 0.0
      %190 = vmatpush1.msra.mxu0 0.0
      %191 = vmatprep.subr.mxu0 0.0
      %192 = vmatpush1.msra.mxu0 0.0
      %193 = vmatprep.subr.mxu0 0.0
      %194 = vmatpush1.msra.mxu0 0.0
      %195 = vmatprep.subr.mxu0 0.0
      %196 = vmatpush1.msra.mxu0 0.0
      %197 = vmatprep.subr.mxu0 0.0
      %198 = vmatpush1.msra.mxu0 0.0
      %199 = vmatprep.subr.mxu0 0.0
      %200 = vmatpush1.msra.mxu0 0.0
      %201 = vmatprep.subr.mxu0 0.0
      %202 = vmatpush1.msra.mxu0 0.0
      %203 = vmatprep.subr.mxu0 0.0
      %204 = vmatpush1.msra.mxu0 0.0
      %205 = vmatprep.subr.mxu0 0.0
      %206 = vmatpush1.msra.mxu0 0.0
      %207 = vmatprep.subr.mxu0 0.0
      %208 = vmatpush1.msra.mxu0 0.0
      %209 = vmatprep.subr.mxu0 0.0
      %210 = vmatpush1.msra.mxu0 0.0
      %211 = vmatprep.subr.mxu0 0.0
      %212 = vmatpush1.msra.mxu0 0.0
      %213 = vmatprep.subr.mxu0 0.0
      %214 = vmatpush1.msra.mxu0 0.0
      %215 = vmatprep.subr.mxu0 0.0
      %216 = vmatpush1.msra.mxu0 0.0
      %217 = vmatprep.subr.mxu0 0.0
      %218 = vmatpush1.msra.mxu0 0.0
      %219 = vmatprep.subr.mxu0 0.0
      %220 = vmatpush1.msra.mxu0 0.0
      %221 = vmatprep.subr.mxu0 0.0
      %222 = vmatpush1.msra.mxu0 0.0
      %223 = vmatprep.subr.mxu0 0.0
      %224 = vmatpush1.msra.mxu0 0.0
      %225 = vmatprep.subr.mxu0 0.0
      %226 = vmatpush1.msra.mxu0 0.0
      %227 = vmatprep.subr.mxu0 0.0
      %228 = vmatpush1.msra.mxu0 0.0
      %229 = vmatprep.subr.mxu0 0.0
      %230 = vmatpush1.msra.mxu0 0.0
      %231 = vmatprep.subr.mxu0 0.0
      %232 = vmatpush1.msra.mxu0 0.0
      %233 = vmatprep.subr.mxu0 0.0
      %234 = vmatpush1.msra.mxu0 0.0
      %235 = vmatprep.mubr.f32.mxu0 0.0
      %236 = vmatmul.mubr.f32.gmra.mrb[0].mxu0 %v169
      %v237 = vpop.f32.mrb[0].mxu0
      %v238 = vadd.f32 0.0, %v237
      %v239 = vpop.f32.mrb[0].mxu0
      %240 = vdwg.mxu0
      %241 = vst [vmem:[#allocation2] sm:$0xff] %v238
      %242 = vst [vmem:[%s158] sm:$0xff] %v238
      %p243 = scmp.lt.s32.totalorder %s18, 2
      %s244 = scalar_select %p243, %s18, 2
      %p245 = scmp.lt.s32.totalorder %s17, 0
      %s246 = scalar_select %p245, %s17, 0
      %s247 = sadd.s32 %s246, %s244
      %s248 = smul.addr %s247, 8
      %s249 = scalar_lea.vmem %s2, %s248
      // Predicated region
      $region33: #{gcn_forward.1} parent=27 // pred_check
        %p250 = pneg %p92
      $region34: #{gcn_forward.1} parent=27 // pred_check_branch
        %252 = sbr.rel (%p250) target = $region36
      $region35: #{gcn_forward.1} parent=27 // pred_region
        _
      $region36: #{gcn_forward.1} parent=27 // pred_fallthru
        _
    $region28: #{gcn_forward.1} parent=5 // pred_fallthru
      _
    %p253 = scmp.le.s32.totalorder 2, %s8
    // Predicated region
    $region37: #{gcn_forward.1} parent=5 // pred_check
      %p254 = pneg %p253
    $region38: #{gcn_forward.1} parent=5 // pred_check_branch
      %256 = sbr.rel (%p254) target = $region40
    $region39: #{gcn_forward.1} parent=5 // pred_region
      %s257 = ssub.s32 %s8, 2
      // Predicated region
      $region41: #{gcn_forward.1} parent=39 // pred_check
        %p258 = pneg %p98
      $region42: #{gcn_forward.1} parent=39 // pred_check_branch
        %260 = sbr.rel (%p258) target = $region44
      $region43: #{gcn_forward.1} parent=39 // pred_region
        %p261 = scmp.lt.s32.totalorder %s20, 2
        %s262 = scalar_select %p261, %s20, 2
        %p263 = scmp.lt.s32.totalorder %s19, 0
        %s264 = scalar_select %p263, %s19, 0
        %s265 = sadd.s32 %s264, %s262
        %s266 = smul.addr %s265, 8
        %s267 = scalar_lea.vmem %s2, %s266
      $region44: #{gcn_forward.1} parent=39 // pred_fallthru
        _
    $region40: #{gcn_forward.1} parent=5 // pred_fallthru
      _
  $region6: #{gcn_forward.1} parent=0 // loop_footer
    %s12 = sadd.s32 1, %s8
  $region7: #{gcn_forward.1} parent=0 // loop_footer_branch
    %7 = sbr.rel target = $region3
  $region8: #{gcn_forward.1} parent=0 // loop_exit
    _

</llo_original>
